<compile_context>
chip_gen: v7x
topology: tpu7x:2x2x1
jax: 0.10.0
libtpu: 0.0.40
codegen_flags: <defaults>
</compile_context>

<pallas_src>
import functools
import math

import jax
import jax.numpy as jnp
from jax import lax
from jax.experimental import pallas as pl
from jax.experimental.pallas import tpu as pltpu

_LANE = 128     # TPU lane width (last dim)
_SUBLANE = 8    # TPU sublane width (second-to-last dim, f32)


def _round_up(n, m):
    return ((n + m - 1) // m) * m


def _pad_axis(a, axis, size):
    if a.shape[axis] == size:
        return a
    pads = [(0, 0)] * a.ndim
    pads[axis] = (0, size - a.shape[axis])
    return jnp.pad(a, pads)


def _sigmoid(x):
    # Single EUP transcendental (tanh) instead of exp + reciprocal.
    return 0.5 * (jnp.tanh(0.5 * x) + 1.0)


def _split_and_pad_params(w_t, b, in_dim, hidden_dim):
    """Split the fused Linear weight into W_hh / W_ih and pad to lane tiles.

    w_t: (hidden_dim + in_dim, 4*hidden_dim) == PyTorch weight.T, rows ordered
         [h-part ; x-part] because the module does cat([ht_1, xt], dim=1).
    Returns (w_hh_p, w_ih_p, b_p) of shapes (Hp, 4Hp), (Dp, 4Hp), (1, 4Hp),
    with each gate occupying its own 128-aligned Hp-wide column slot.
    (One-time wrapper glue, not part of the hot path.)
    """
    H, D = hidden_dim, in_dim
    Hp = _round_up(H, _LANE)
    Dp = _round_up(D, _LANE)

    w_hh = w_t[:H, :]   # (H, 4H)   hidden -> gates
    w_ih = w_t[H:, :]   # (D, 4H)   input  -> gates

    def pad_gate_cols(w):
        # (R, 4H) -> (R, 4Hp): each gate's H columns into an Hp-wide slot.
        if Hp == H:
            return w
        gates = [_pad_axis(w[:, k * H:(k + 1) * H], 1, Hp) for k in range(4)]
        return jnp.concatenate(gates, axis=1)

    w_hh_p = _pad_axis(pad_gate_cols(w_hh), 0, Hp)                 # (Hp, 4Hp)
    w_ih_p = _pad_axis(pad_gate_cols(w_ih), 0, Dp)                 # (Dp, 4Hp)
    b_p = _pad_axis(b.reshape(4, H), 1, Hp).reshape(1, 4 * Hp)     # (1, 4Hp)
    return w_hh_p, w_ih_p, b_p


# ----------------------------------------------------------------------------
# Single-step kernel (matches the module's forward exactly)
# ----------------------------------------------------------------------------
def _lstm_cell_kernel(x_ref, h_ref, c_ref, wih_ref, whh_ref, b_ref,
                      ht_ref, ct_ref):
    Hp = ht_ref.shape[1]

    # Gate pre-activations: two bf16 MXU matmuls, f32 accumulate.
    z = jnp.dot(h_ref[...].astype(jnp.bfloat16), whh_ref[...],
                preferred_element_type=jnp.float32)
    z = z + jnp.dot(x_ref[...].astype(jnp.bfloat16), wih_ref[...],
                    preferred_element_type=jnp.float32)
    z = z + b_ref[...]

    # Gate order matches view(B,4,H)+unbind: [i, f, o, g]; 128-aligned slices.
    i = _sigmoid(z[:, 0 * Hp:1 * Hp])
    f = _sigmoid(z[:, 1 * Hp:2 * Hp])
    o = _sigmoid(z[:, 2 * Hp:3 * Hp])
    g = jnp.tanh(z[:, 3 * Hp:4 * Hp])

    ct = f * c_ref[...].astype(jnp.float32) + i * g
    ht_ref[...] = (o * jnp.tanh(ct)).astype(ht_ref.dtype)
    ct_ref[...] = ct.astype(ct_ref.dtype)


def lstm_cell(xt, w_t, b, ht_1=None, ct_1=None):
    """Single LSTM-cell step.

    xt:  (B, in_dim)
    w_t: (in_dim + hidden_dim, 4*hidden_dim)  (= PyTorch weight.T)
    b:   (4*hidden_dim,)
    """
    B, D = xt.shape
    total_in, four_h = w_t.shape
    H = four_h // 4
    assert total_in == D + H

    dtype = xt.dtype
    if ht_1 is None:
        ht_1 = jnp.zeros((B, H), dtype=dtype)
    if ct_1 is None:
        ct_1 = jnp.zeros((B, H), dtype=dtype)

    Bp = _round_up(B, _SUBLANE)
    Hp = _round_up(H, _LANE)
    Dp = _round_up(D, _LANE)

    w_hh_p, w_ih_p, b_p = _split_and_pad_params(w_t, b, D, H)
    w_hh_bf = w_hh_p.astype(jnp.bfloat16)
    w_ih_bf = w_ih_p.astype(jnp.bfloat16)

    x_p = _pad_axis(_pad_axis(xt, 1, Dp), 0, Bp)
    h_p = _pad_axis(_pad_axis(ht_1, 1, Hp), 0, Bp)
    c_p = _pad_axis(_pad_axis(ct_1, 1, Hp), 0, Bp)

    # Only alias c_{t-1} -> ct when padding produced a private copy, so the
    # caller's buffer is never donated behind their back.
    donate_c = (Bp != B) or (Hp != H)

    vmem = pl.BlockSpec(memory_space=pltpu.MemorySpace.VMEM)

    ht_p, ct_p = pl.pallas_call(
        _lstm_cell_kernel,
        out_shape=(jax.ShapeDtypeStruct((Bp, Hp), dtype),    # ht
                   jax.ShapeDtypeStruct((Bp, Hp), dtype)),   # ct
        in_specs=[vmem] * 6,
        out_specs=(vmem, vmem),
        input_output_aliases=({2: 1} if donate_c else {}),
    )(x_p, h_p, c_p, w_ih_bf, w_hh_bf, b_p)

    return ht_p[:B, :H], ct_p[:B, :H]


# ----------------------------------------------------------------------------
# Fused-sequence kernel: whole time loop in one pallas_call, time-chunked grid
# ----------------------------------------------------------------------------
def _lstm_seq_kernel(x_ref, wih_hbm, whh_hbm, b_ref, h0_ref, c0_ref,
                     h_all_ref, c_out_ref,
                     wih_sc, whh_sc, zx_sc, h_sc, c_sc, wsem, *, t_last):
    chunk = pl.program_id(0)
    tc, bp, dp = x_ref.shape
    hp = h_sc.shape[1]

    @pl.when(chunk == 0)
    def _():
        # DMA the weights ONCE into single-buffered VMEM scratch; they stay
        # resident for the whole grid (no 2x pipeline double-buffer).
        cp_ih = pltpu.make_async_copy(wih_hbm, wih_sc, wsem.at[0])
        cp_hh = pltpu.make_async_copy(whh_hbm, whh_sc, wsem.at[1])
        cp_ih.start()
        cp_hh.start()
        cp_ih.wait()
        cp_hh.wait()
        h_sc[...] = h0_ref[...].astype(jnp.float32)
        c_sc[...] = c0_ref[...].astype(jnp.float32)

    # Fused input projection for the whole chunk: one large bf16 MXU matmul
    # (tc*bp, dp) x (dp, 4*hp) with f32 accumulation; bias folded in once.
    x_flat = x_ref[...].reshape(tc * bp, dp).astype(jnp.bfloat16)
    zx = jnp.dot(x_flat, wih_sc[...], preferred_element_type=jnp.float32)
    zx_sc[...] = (zx + b_ref[...]).reshape(tc, bp, 4 * hp)

    whh = whh_sc[...]   # resident bf16 weight

    def step(s, carry):
        h, c = carry    # f32 (bp, hp)
        # Recurrent hot path: one (bp, hp) x (hp, 4hp) bf16 MXU matmul.
        z = jnp.dot(h.astype(jnp.bfloat16), whh,
                    preferred_element_type=jnp.float32)
        z = z + zx_sc[s]

        i = _sigmoid(z[:, 0 * hp:1 * hp])
        f = _sigmoid(z[:, 1 * hp:2 * hp])
        o = _sigmoid(z[:, 2 * hp:3 * hp])
        g = jnp.tanh(z[:, 3 * hp:4 * hp])

        c_new = f * c + i * g
        h_new = o * jnp.tanh(c_new)

        h_all_ref[s] = h_new.astype(h_all_ref.dtype)

        # Capture the cell state at the true last timestep (the time axis may
        # be padded up to a multiple of the chunk size).
        @pl.when(chunk * tc + s == t_last)
        def _():
            c_out_ref[...] = c_new.astype(c_out_ref.dtype)

        return h_new, c_new

    h_fin, c_fin = lax.fori_loop(0, tc, step, (h_sc[...], c_sc[...]),
                                 unroll=True)
    h_sc[...] = h_fin
    c_sc[...] = c_fin


def lstm_sequence(xs, w_t, b, h0=None, c0=None, time_chunk=8):
    """Runs the LSTM cell over a whole sequence in ONE pallas_call.

    xs: (T, B, in_dim).  Returns (h_all: (T, B, H), c_T: (B, H)).
    """
    T, B, D = xs.shape
    total_in, four_h = w_t.shape
    H = four_h // 4
    assert total_in == D + H

    dtype = xs.dtype
    if h0 is None:
        h0 = jnp.zeros((B, H), dtype=dtype)
    if c0 is None:
        c0 = jnp.zeros((B, H), dtype=dtype)

    Bp = _round_up(B, _SUBLANE)
    Hp = _round_up(H, _LANE)
    Dp = _round_up(D, _LANE)

    Tc = max(1, min(time_chunk, T))     # timesteps per grid step
    Tp = _round_up(T, Tc)
    n_chunks = Tp // Tc

    w_hh_p, w_ih_p, b_p = _split_and_pad_params(w_t, b, D, H)
    w_hh_bf = w_hh_p.astype(jnp.bfloat16)
    w_ih_bf = w_ih_p.astype(jnp.bfloat16)

    xs_p = _pad_axis(_pad_axis(_pad_axis(xs, 2, Dp), 1, Bp), 0, Tp)
    h0_p = _pad_axis(_pad_axis(h0, 1, Hp), 0, Bp)
    c0_p = _pad_axis(_pad_axis(c0, 1, Hp), 0, Bp)

    kernel = functools.partial(_lstm_seq_kernel, t_last=T - 1)

    # TODO(synk): on v7x, add a leading batch-parallel grid axis (2 TCs) with
    # per-batch-block h/c scratch and c_out writeback; kept single-block here.
    h_all_p, c_last_p = pl.pallas_call(
        kernel,
        out_shape=(jax.ShapeDtypeStruct((Tp, Bp, Hp), dtype),   # h_t per step
                   jax.ShapeDtypeStruct((Bp, Hp), dtype)),      # final cell
        grid=(n_chunks,),
        in_specs=[
            pl.BlockSpec((Tc, Bp, Dp), lambda c: (c, 0, 0)),    # x chunk
            pl.BlockSpec(memory_space=pl.ANY),                  # W_ih (HBM)
            pl.BlockSpec(memory_space=pl.ANY),                  # W_hh (HBM)
            pl.BlockSpec((1, 4 * Hp), lambda c: (0, 0)),        # bias
            pl.BlockSpec((Bp, Hp), lambda c: (0, 0)),           # h0
            pl.BlockSpec((Bp, Hp), lambda c: (0, 0)),           # c0
        ],
        out_specs=(
            pl.BlockSpec((Tc, Bp, Hp), lambda c: (c, 0, 0)),    # h chunk
            pl.BlockSpec((Bp, Hp), lambda c: (0, 0)),           # c_T
        ),
        scratch_shapes=[
            pltpu.VMEM((Dp, 4 * Hp), jnp.bfloat16),     # resident W_ih
            pltpu.VMEM((Hp, 4 * Hp), jnp.bfloat16),     # resident W_hh
            pltpu.VMEM((Tc, Bp, 4 * Hp), jnp.float32),  # per-chunk x proj
            pltpu.VMEM((Bp, Hp), jnp.float32),          # carried h (f32)
            pltpu.VMEM((Bp, Hp), jnp.float32),          # carried c (f32)
            pltpu.SemaphoreType.DMA((2,)),              # weight-copy sems
        ],
        compiler_params=pltpu.CompilerParams(
            dimension_semantics=("arbitrary",),          # time recurrence
            vmem_limit_bytes=64 * 1024 * 1024),
    )(xs_p, w_ih_bf, w_hh_bf, b_p, h0_p, c0_p)

    return h_all_p[:T, :B, :H], c_last_p[:B, :H]


# ----------------------------------------------------------------------------
# Pure-JAX reference mirroring the PyTorch module exactly (f32)
# ----------------------------------------------------------------------------
def _reference_lstm_cell(xt, w_t, b, ht_1, ct_1):
    xc = jnp.concatenate([ht_1, xt], axis=1)
    z = xc @ w_t + b
    B = xt.shape[0]
    H = w_t.shape[1] // 4
    z = z.reshape(B, 4, H)
    i = jax.nn.sigmoid(z[:, 0])
    f = jax.nn.sigmoid(z[:, 1])
    o = jax.nn.sigmoid(z[:, 2])
    g = jnp.tanh(z[:, 3])
    ct = f * ct_1 + i * g
    ht = o * jnp.tanh(ct)
    return ht, ct


if __name__ == "__main__":
    batch_size, in_dim, hidden_dim, seq_len = 8, 32, 32, 12

    key = jax.random.PRNGKey(0)
    k_x, k_h, k_c, k_w, k_b, k_s = jax.random.split(key, 6)

    xt = jax.random.normal(k_x, (batch_size, in_dim), dtype=jnp.float32)
    ht_1 = jax.random.normal(k_h, (batch_size, hidden_dim), dtype=jnp.float32)
    ct_1 = jax.random.normal(k_c, (batch_size, hidden_dim), dtype=jnp.float32)

    # Deterministic Linear parameters, PyTorch-default-style uniform init.
    fan_in = in_dim + hidden_dim
    bound = 1.0 / math.sqrt(fan_in)
    # PyTorch weight is (4H, fan_in); we store its transpose (fan_in, 4H).
    w_t = jax.random.uniform(k_w, (fan_in, 4 * hidden_dim),
                             minval=-bound, maxval=bound, dtype=jnp.float32)
    b = jax.random.uniform(k_b, (4 * hidden_dim,),
                           minval=-bound, maxval=bound, dtype=jnp.float32)

    # --- single step (module semantics); bf16 matmuls -> looser tolerance ---
    ht_ref, ct_ref = _reference_lstm_cell(xt, w_t, b, ht_1, ct_1)
    ht, ct = lstm_cell(xt, w_t, b, ht_1, ct_1)
    jax.block_until_ready((ht, ct))
    assert ht.shape == (batch_size, hidden_dim)
    assert ct.shape == (batch_size, hidden_dim)
    assert jnp.allclose(ht, ht_ref, atol=2e-2, rtol=2e-2)
    assert jnp.allclose(ct, ct_ref, atol=2e-2, rtol=2e-2)

    # --- "None" state path (zero init), as in the module ---
    zeros = jnp.zeros((batch_size, hidden_dim), jnp.float32)
    ht0_ref, ct0_ref = _reference_lstm_cell(xt, w_t, b, zeros, zeros)
    ht0, ct0 = lstm_cell(xt, w_t, b)
    jax.block_until_ready((ht0, ct0))
    assert jnp.allclose(ht0, ht0_ref, atol=2e-2, rtol=2e-2)
    assert jnp.allclose(ct0, ct0_ref, atol=2e-2, rtol=2e-2)

    # --- fused sequence: time-chunked recurrence in one pallas_call ---
    xs = jax.random.normal(k_s, (seq_len, batch_size, in_dim),
                           dtype=jnp.float32)
    h_all, c_last = lstm_sequence(xs, w_t, b, ht_1, ct_1, time_chunk=8)
    jax.block_until_ready((h_all, c_last))

    h_r, c_r = ht_1, ct_1
    hs_ref = []
    for t in range(seq_len):
        h_r, c_r = _reference_lstm_cell(xs[t], w_t, b, h_r, c_r)
        hs_ref.append(h_r)
    hs_ref = jnp.stack(hs_ref, axis=0)

    assert h_all.shape == (seq_len, batch_size, hidden_dim)
    assert c_last.shape == (batch_size, hidden_dim)
    assert jnp.allclose(h_all, hs_ref, atol=5e-2, rtol=5e-2)
    assert jnp.allclose(c_last, c_r, atol=5e-2, rtol=5e-2)

    print("KERNEL_OK")
</pallas_src>

<mosaic_0001>
module attributes {stable_mosaic.version = 11 : i64} {
  func.func @_lstm_cell_kernel(%arg0: memref<8x128xf32, #tpu.memory_space<vmem>>, %arg1: memref<8x128xf32, #tpu.memory_space<vmem>>, %arg2: memref<8x128xf32, #tpu.memory_space<vmem>>, %arg3: memref<128x512xbf16, #tpu.memory_space<vmem>>, %arg4: memref<128x512xbf16, #tpu.memory_space<vmem>>, %arg5: memref<1x512xf32, #tpu.memory_space<vmem>>, %arg6: memref<8x128xf32, #tpu.memory_space<vmem>>, %arg7: memref<8x128xf32, #tpu.memory_space<vmem>>) attributes {dimension_semantics = [], scalar_prefetch = 0 : i64, scratch_operands = 0 : i64, tpu.core_type = #tpu.core_type<tc>} {
    %c0 = arith.constant 0 : index
    %c0_0 = arith.constant 0 : index
    %0 = vector.load %arg1[%c0, %c0_0] : memref<8x128xf32, #tpu.memory_space<vmem>>, vector<8x128xf32>
    %1 = arith.truncf %0 : vector<8x128xf32> to vector<8x128xbf16>
    %c0_1 = arith.constant 0 : index
    %c0_2 = arith.constant 0 : index
    %2 = vector.load %arg4[%c0_1, %c0_2] : memref<128x512xbf16, #tpu.memory_space<vmem>>, vector<128x512xbf16>
    %cst = arith.constant dense<0.000000e+00> : vector<8x512xf32>
    %3 = tpu.matmul %1, %2, %cst {dimension_numbers = #tpu.dot_dimension_numbers<[1], [0], [0], [1], [0, 0, 1, 1], [], []>} : vector<8x128xbf16>, vector<128x512xbf16>, vector<8x512xf32> -> vector<8x512xf32>
    %c0_3 = arith.constant 0 : index
    %c0_4 = arith.constant 0 : index
    %4 = vector.load %arg0[%c0_3, %c0_4] : memref<8x128xf32, #tpu.memory_space<vmem>>, vector<8x128xf32>
    %5 = arith.truncf %4 : vector<8x128xf32> to vector<8x128xbf16>
    %c0_5 = arith.constant 0 : index
    %c0_6 = arith.constant 0 : index
    %6 = vector.load %arg3[%c0_5, %c0_6] : memref<128x512xbf16, #tpu.memory_space<vmem>>, vector<128x512xbf16>
    %cst_7 = arith.constant dense<0.000000e+00> : vector<8x512xf32>
    %7 = tpu.matmul %5, %6, %cst_7 {dimension_numbers = #tpu.dot_dimension_numbers<[1], [0], [0], [1], [0, 0, 1, 1], [], []>} : vector<8x128xbf16>, vector<128x512xbf16>, vector<8x512xf32> -> vector<8x512xf32>
    %8 = arith.addf %3, %7 : vector<8x512xf32>
    %c0_8 = arith.constant 0 : index
    %c0_9 = arith.constant 0 : index
    %9 = vector.load %arg5[%c0_8, %c0_9] : memref<1x512xf32, #tpu.memory_space<vmem>>, vector<1x512xf32>
    %10 = vector.broadcast %9 : vector<1x512xf32> to vector<8x512xf32>
    %11 = arith.addf %8, %10 : vector<8x512xf32>
    %12 = vector.extract_strided_slice %11 {offsets = [0, 0], sizes = [8, 128], strides = [1, 1]} : vector<8x512xf32> to vector<8x128xf32>
    %cst_10 = arith.constant 5.000000e-01 : f32
    %13 = vector.broadcast %cst_10 : f32 to vector<8x128xf32>
    %14 = arith.mulf %13, %12 : vector<8x128xf32>
    %15 = math.tanh %14 : vector<8x128xf32>
    %cst_11 = arith.constant 1.000000e+00 : f32
    %16 = vector.broadcast %cst_11 : f32 to vector<8x128xf32>
    %17 = arith.addf %15, %16 : vector<8x128xf32>
    %cst_12 = arith.constant 5.000000e-01 : f32
    %18 = vector.broadcast %cst_12 : f32 to vector<8x128xf32>
    %19 = arith.mulf %18, %17 : vector<8x128xf32>
    %20 = vector.extract_strided_slice %11 {offsets = [0, 128], sizes = [8, 128], strides = [1, 1]} : vector<8x512xf32> to vector<8x128xf32>
    %cst_13 = arith.constant 5.000000e-01 : f32
    %21 = vector.broadcast %cst_13 : f32 to vector<8x128xf32>
    %22 = arith.mulf %21, %20 : vector<8x128xf32>
    %23 = math.tanh %22 : vector<8x128xf32>
    %cst_14 = arith.constant 1.000000e+00 : f32
    %24 = vector.broadcast %cst_14 : f32 to vector<8x128xf32>
    %25 = arith.addf %23, %24 : vector<8x128xf32>
    %cst_15 = arith.constant 5.000000e-01 : f32
    %26 = vector.broadcast %cst_15 : f32 to vector<8x128xf32>
    %27 = arith.mulf %26, %25 : vector<8x128xf32>
    %28 = vector.extract_strided_slice %11 {offsets = [0, 256], sizes = [8, 128], strides = [1, 1]} : vector<8x512xf32> to vector<8x128xf32>
    %cst_16 = arith.constant 5.000000e-01 : f32
    %29 = vector.broadcast %cst_16 : f32 to vector<8x128xf32>
    %30 = arith.mulf %29, %28 : vector<8x128xf32>
    %31 = math.tanh %30 : vector<8x128xf32>
    %cst_17 = arith.constant 1.000000e+00 : f32
    %32 = vector.broadcast %cst_17 : f32 to vector<8x128xf32>
    %33 = arith.addf %31, %32 : vector<8x128xf32>
    %cst_18 = arith.constant 5.000000e-01 : f32
    %34 = vector.broadcast %cst_18 : f32 to vector<8x128xf32>
    %35 = arith.mulf %34, %33 : vector<8x128xf32>
    %36 = vector.extract_strided_slice %11 {offsets = [0, 384], sizes = [8, 128], strides = [1, 1]} : vector<8x512xf32> to vector<8x128xf32>
    %37 = math.tanh %36 : vector<8x128xf32>
    %c0_19 = arith.constant 0 : index
    %c0_20 = arith.constant 0 : index
    %38 = vector.load %arg2[%c0_19, %c0_20] : memref<8x128xf32, #tpu.memory_space<vmem>>, vector<8x128xf32>
    %39 = arith.mulf %27, %38 : vector<8x128xf32>
    %40 = arith.mulf %19, %37 : vector<8x128xf32>
    %41 = arith.addf %39, %40 : vector<8x128xf32>
    %42 = math.tanh %41 : vector<8x128xf32>
    %43 = arith.mulf %35, %42 : vector<8x128xf32>
    %c0_21 = arith.constant 0 : index
    %c0_22 = arith.constant 0 : index
    %44 = vector.load %arg6[%c0_21, %c0_22] : memref<8x128xf32, #tpu.memory_space<vmem>>, vector<8x128xf32>
    tpu.vector_store %arg6[%c0_21, %c0_22], %43 {strides = array<i32>} : memref<8x128xf32, #tpu.memory_space<vmem>>, vector<8x128xf32>,
    %c0_23 = arith.constant 0 : index
    %c0_24 = arith.constant 0 : index
    %45 = vector.load %arg7[%c0_23, %c0_24] : memref<8x128xf32, #tpu.memory_space<vmem>>, vector<8x128xf32>
    tpu.vector_store %arg7[%c0_23, %c0_24], %41 {strides = array<i32>} : memref<8x128xf32, #tpu.memory_space<vmem>>, vector<8x128xf32>,
    return
  }
}

</mosaic_0001>

<llo_original>
// kernel: tpu_custom_call.1
$region0: #{tpu_custom_call.1}
  #allocation0 [shape = 'u32[]', space=smem, size = 0x4, offset = 0x4, fixed_abs, tag = 'smem constant byte address 0x4 - core index']
  #allocation1 [shape = 'u32[144,128]{1,0:T(1,128)}', space=vmem, size = 0x12000, scoped, tag = 'internal scratch']
  %s0 = inlined_call_operand.vmem [shape: f32[8,128], index: 0, kind: input, shape index: {}]
  %s1 = inlined_call_operand.vmem [shape: f32[8,128], index: 1, kind: input, shape index: {}]
  %s2 = inlined_call_operand.hbm [shape: f32[8,128], index: 2, kind: input, shape index: {}, may-alias: {2,7}]
  %s3 = inlined_call_operand.hbm [shape: bf16[128,512], index: 3, kind: input, shape index: {}]
  %s4 = inlined_call_operand.hbm [shape: bf16[128,512], index: 4, kind: input, shape index: {}]
  %s5 = inlined_call_operand.hbm [shape: f32[1,512], index: 5, kind: input, shape index: {}]
  %s6 = inlined_call_operand.hbm [shape: f32[8,128], index: 6, kind: output, shape index: {0}]
  %s7 = inlined_call_operand.hbm [shape: f32[8,128], index: 7, kind: output, shape index: {1}, may-alias: {2,7}]
  %8 = xla_tuple %s6, %s7
  %s9 = sld [smem:[#allocation0]]
  $region58: #{tpu_custom_call.1} parent=0
    _
  %s11 = ssub.s32 1, %s9
  %s12 = scalar_select 0, %s11, %s9
  $region1: #{tpu_custom_call.1} parent=0
    #allocation2 [shape = 'u8[4096]{0}', space=vmem, size = 0x1000, scoped, tag = 'input window, operand 2, single buffered']
    #allocation3 [shape = 's32[1]{0}', space=sflag, size = 0x4, scoped, tag = 'scoped memory for tpu_custom_call.1']
    #allocation4 [shape = 's32[1]{0}', space=sflag, size = 0x4, scoped, tag = 'scoped memory for tpu_custom_call.1']
    #allocation5 [shape = 'u8[131072]{0}', space=vmem, size = 0x20000, scoped, tag = 'input window, operand 3, single buffered']
    #allocation6 [shape = 's32[1]{0}', space=sflag, size = 0x4, scoped, tag = 'scoped memory for tpu_custom_call.1']
    #allocation7 [shape = 'u8[131072]{0}', space=vmem, size = 0x20000, scoped, tag = 'input window, operand 4, single buffered']
    #allocation8 [shape = 'u8[2048]{0}', space=vmem, size = 0x800, scoped, tag = 'input window, operand 5, single buffered']
    #allocation9 [shape = 's32[1]{0}', space=sflag, size = 0x4, scoped, tag = 'scoped memory for tpu_custom_call.1']
    #allocation10 [shape = 'u8[4096]{0}', space=vmem, size = 0x1000, scoped, tag = 'output window, operand 0, single buffered']
    #allocation11 [shape = 'u8[4096]{0}', space=vmem, size = 0x1000, scoped, tag = 'output window, operand 1, single buffered']
    #allocation12 [shape = 's32[1]{0}', space=sflag, size = 0x4, scoped, tag = 'scoped memory for tpu_custom_call.1']
    %13 = vsyncpa [#allocation3], 0
    %14 = vsyncpa [#allocation6], 0
    %15 = vsyncpa [#allocation9], 0
    %16 = vsyncpa [#allocation4], 0
    %17 = vsyncpa [#allocation12], 0
    // Predicated region
    $region2: #{tpu_custom_call.1} parent=1 // pred_check
      _
    $region3: #{tpu_custom_call.1} parent=1 // pred_check_branch
      %19 = sbr.rel (0) target = $region5
    $region4: #{tpu_custom_call.1} parent=1 // pred_region
      _
    $region5: #{tpu_custom_call.1} parent=1 // pred_fallthru
      _
    // Predicated region
    $region6: #{tpu_custom_call.1} parent=1 // pred_check
      _
    $region7: #{tpu_custom_call.1} parent=1 // pred_check_branch
      %21 = sbr.rel (0) target = $region9
    $region8: #{tpu_custom_call.1} parent=1 // pred_region
      _
    $region9: #{tpu_custom_call.1} parent=1 // pred_fallthru
      _
    // Predicated region
    $region10: #{tpu_custom_call.1} parent=1 // pred_check
      _
    $region11: #{tpu_custom_call.1} parent=1 // pred_check_branch
      %23 = sbr.rel (0) target = $region13
    $region12: #{tpu_custom_call.1} parent=1 // pred_region
      %s25 = ssub.s32 128, 128
      %26 = vsyncadd [#allocation3], %s25
      %s28 = sshll.u32 [#allocation2], 4
      %s29 = int_to_ptr.vmem [resolvable:$true] %s28
      %31 = dma.hbm_to_vmem [thread:$0]  %s2, 128, %s29, [#allocation3]
    $region13: #{tpu_custom_call.1} parent=1 // pred_fallthru
      _
    // Predicated region
    $region14: #{tpu_custom_call.1} parent=1 // pred_check
      _
    $region15: #{tpu_custom_call.1} parent=1 // pred_check_branch
      %33 = sbr.rel (0) target = $region17
    $region16: #{tpu_custom_call.1} parent=1 // pred_region
      %s35 = ssub.s32 4096, 4096
      %36 = vsyncadd [#allocation6], %s35
      %s37 = sshll.u32 [#allocation5], 4
      %s38 = int_to_ptr.vmem [resolvable:$true] %s37
      %43 = dma.hbm_to_vmem [thread:$0]  %s3, 4096, %s38, [#allocation6], 256, 256, 16
    $region17: #{tpu_custom_call.1} parent=1 // pred_fallthru
      _
    // Predicated region
    $region18: #{tpu_custom_call.1} parent=1 // pred_check
      _
    $region19: #{tpu_custom_call.1} parent=1 // pred_check_branch
      %45 = sbr.rel (0) target = $region21
    $region20: #{tpu_custom_call.1} parent=1 // pred_region
      %s47 = ssub.s32 4096, 4096
      %48 = vsyncadd [#allocation6], %s47
      %s49 = sshll.u32 [#allocation7], 4
      %s50 = int_to_ptr.vmem [resolvable:$true] %s49
      %55 = dma.hbm_to_vmem [thread:$0]  %s4, 4096, %s50, [#allocation6], 256, 256, 16
    $region21: #{tpu_custom_call.1} parent=1 // pred_fallthru
      _
    // Predicated region
    $region22: #{tpu_custom_call.1} parent=1 // pred_check
      _
    $region23: #{tpu_custom_call.1} parent=1 // pred_check_branch
      %57 = sbr.rel (0) target = $region25
    $region24: #{tpu_custom_call.1} parent=1 // pred_region
      %s59 = ssub.s32 64, 64
      %60 = vsyncadd [#allocation9], %s59
      %s62 = sshll.u32 [#allocation8], 4
      %s63 = int_to_ptr.vmem [resolvable:$true] %s62
      %65 = dma.hbm_to_vmem [thread:$0]  %s5, 64, %s63, [#allocation9]
    $region25: #{tpu_custom_call.1} parent=1 // pred_fallthru
      _
    // Predicated region
    $region26: #{tpu_custom_call.1} parent=1 // pred_check
      _
    $region27: #{tpu_custom_call.1} parent=1 // pred_check_branch
      %67 = sbr.rel (0) target = $region29
    $region28: #{tpu_custom_call.1} parent=1 // pred_region
      %68 = dma.done [#allocation3], 128
    $region29: #{tpu_custom_call.1} parent=1 // pred_fallthru
      _
    // Predicated region
    $region30: #{tpu_custom_call.1} parent=1 // pred_check
      _
    $region31: #{tpu_custom_call.1} parent=1 // pred_check_branch
      %70 = sbr.rel (0) target = $region33
    $region32: #{tpu_custom_call.1} parent=1 // pred_region
      %71 = dma.done [#allocation6], 4096
    $region33: #{tpu_custom_call.1} parent=1 // pred_fallthru
      _
    // Predicated region
    $region34: #{tpu_custom_call.1} parent=1 // pred_check
      _
    $region35: #{tpu_custom_call.1} parent=1 // pred_check_branch
      %73 = sbr.rel (0) target = $region37
    $region36: #{tpu_custom_call.1} parent=1 // pred_region
      %74 = dma.done [#allocation6], 4096
    $region37: #{tpu_custom_call.1} parent=1 // pred_fallthru
      _
    // Predicated region
    $region38: #{tpu_custom_call.1} parent=1 // pred_check
      _
    $region39: #{tpu_custom_call.1} parent=1 // pred_check_branch
      %76 = sbr.rel (0) target = $region41
    $region40: #{tpu_custom_call.1} parent=1 // pred_region
      %77 = dma.done [#allocation9], 64
    $region41: #{tpu_custom_call.1} parent=1 // pred_fallthru
      _
    %v79 = vld [vmem:[%s1] sm:$0xff]
    %v80 = vpack.c.bf16 %v79, %v79
    %v81 = vld [vmem:[#allocation7] sm:$0xff]
    %v82 = vld [vmem:[#allocation7 + $0x8] sm:$0xff]
    %v83 = vld [vmem:[#allocation7 + $0x10] sm:$0xff]
    %v84 = vld [vmem:[#allocation7 + $0x18] sm:$0xff]
    %v85 = vld [vmem:[#allocation7 + $0x20] sm:$0xff]
    %v86 = vld [vmem:[#allocation7 + $0x28] sm:$0xff]
    %v87 = vld [vmem:[#allocation7 + $0x30] sm:$0xff]
    %v88 = vld [vmem:[#allocation7 + $0x38] sm:$0xff]
    %v89 = vld [vmem:[#allocation7 + $0x40] sm:$0xff]
    %v90 = vld [vmem:[#allocation7 + $0x48] sm:$0xff]
    %v91 = vld [vmem:[#allocation7 + $0x50] sm:$0xff]
    %v92 = vld [vmem:[#allocation7 + $0x58] sm:$0xff]
    %v93 = vld [vmem:[#allocation7 + $0x60] sm:$0xff]
    %v94 = vld [vmem:[#allocation7 + $0x68] sm:$0xff]
    %v95 = vld [vmem:[#allocation7 + $0x70] sm:$0xff]
    %v96 = vld [vmem:[#allocation7 + $0x78] sm:$0xff]
    %v97 = vld [vmem:[#allocation7 + $0x80] sm:$0xff]
    %v98 = vld [vmem:[#allocation7 + $0x88] sm:$0xff]
    %v99 = vld [vmem:[#allocation7 + $0x90] sm:$0xff]
    %v100 = vld [vmem:[#allocation7 + $0x98] sm:$0xff]
    %v101 = vld [vmem:[#allocation7 + $0xa0] sm:$0xff]
    %v102 = vld [vmem:[#allocation7 + $0xa8] sm:$0xff]
    %v103 = vld [vmem:[#allocation7 + $0xb0] sm:$0xff]
    %v104 = vld [vmem:[#allocation7 + $0xb8] sm:$0xff]
    %v105 = vld [vmem:[#allocation7 + $0xc0] sm:$0xff]
    %v106 = vld [vmem:[#allocation7 + $0xc8] sm:$0xff]
    %v107 = vld [vmem:[#allocation7 + $0xd0] sm:$0xff]
    %v108 = vld [vmem:[#allocation7 + $0xd8] sm:$0xff]
    %v109 = vld [vmem:[#allocation7 + $0xe0] sm:$0xff]
    %v110 = vld [vmem:[#allocation7 + $0xe8] sm:$0xff]
    %v111 = vld [vmem:[#allocation7 + $0xf0] sm:$0xff]
    %v112 = vld [vmem:[#allocation7 + $0xf8] sm:$0xff]
    %v113 = vld [vmem:[%s0] sm:$0xff]
    %v114 = vpack.c.bf16 %v113, %v113
    %v115 = vld [vmem:[#allocation5] sm:$0xff]
    %v116 = vld [vmem:[#allocation5 + $0x8] sm:$0xff]
    %v117 = vld [vmem:[#allocation5 + $0x10] sm:$0xff]
    %v118 = vld [vmem:[#allocation5 + $0x18] sm:$0xff]
    %v119 = vld [vmem:[#allocation5 + $0x20] sm:$0xff]
    %v120 = vld [vmem:[#allocation5 + $0x28] sm:$0xff]
    %v121 = vld [vmem:[#allocation5 + $0x30] sm:$0xff]
    %v122 = vld [vmem:[#allocation5 + $0x38] sm:$0xff]
    %v123 = vld [vmem:[#allocation5 + $0x40] sm:$0xff]
    %v124 = vld [vmem:[#allocation5 + $0x48] sm:$0xff]
    %v125 = vld [vmem:[#allocation5 + $0x50] sm:$0xff]
    %v126 = vld [vmem:[#allocation5 + $0x58] sm:$0xff]
    %v127 = vld [vmem:[#allocation5 + $0x60] sm:$0xff]
    %v128 = vld [vmem:[#allocation5 + $0x68] sm:$0xff]
    %v129 = vld [vmem:[#allocation5 + $0x70] sm:$0xff]
    %v130 = vld [vmem:[#allocation5 + $0x78] sm:$0xff]
    %v131 = vld [vmem:[#allocation5 + $0x80] sm:$0xff]
    %v132 = vld [vmem:[#allocation5 + $0x88] sm:$0xff]
    %v133 = vld [vmem:[#allocation5 + $0x90] sm:$0xff]
    %v134 = vld [vmem:[#allocation5 + $0x98] sm:$0xff]
    %v135 = vld [vmem:[#allocation5 + $0xa0] sm:$0xff]
    %v136 = vld [vmem:[#allocation5 + $0xa8] sm:$0xff]
    %v137 = vld [vmem:[#allocation5 + $0xb0] sm:$0xff]
    %v138 = vld [vmem:[#allocation5 + $0xb8] sm:$0xff]
    %v139 = vld [vmem:[#allocation5 + $0xc0] sm:$0xff]
    %v140 = vld [vmem:[#allocation5 + $0xc8] sm:$0xff]
    %v141 = vld [vmem:[#allocation5 + $0xd0] sm:$0xff]
    %v142 = vld [vmem:[#allocation5 + $0xd8] sm:$0xff]
    %v143 = vld [vmem:[#allocation5 + $0xe0] sm:$0xff]
    %v144 = vld [vmem:[#allocation5 + $0xe8] sm:$0xff]
    %v145 = vld [vmem:[#allocation5 + $0xf0] sm:$0xff]
    %v146 = vld [vmem:[#allocation5 + $0xf8] sm:$0xff]
    %v179 = vunpack.c.l.b16 %v115
    %v180 = vunpack.c.h.b16 %v115
    %v181 = vunpack.c.l.b16 %v116
    %v182 = vunpack.c.h.b16 %v116
    %v183 = vunpack.c.l.b16 %v117
    %v184 = vunpack.c.h.b16 %v117
    %v185 = vunpack.c.l.b16 %v118
    %v186 = vunpack.c.h.b16 %v118
    %v187 = vunpack.c.l.b16 %v119
    %v188 = vunpack.c.h.b16 %v119
    %v189 = vunpack.c.l.b16 %v120
    %v190 = vunpack.c.h.b16 %v120
    %v191 = vunpack.c.l.b16 %v121
    %v192 = vunpack.c.h.b16 %v121
    %v193 = vunpack.c.l.b16 %v122
    %v194 = vunpack.c.h.b16 %v122
    %v195 = vunpack.c.l.b16 %v123
    %v196 = vunpack.c.h.b16 %v123
    %v197 = vunpack.c.l.b16 %v124
    %v198 = vunpack.c.h.b16 %v124
    %v199 = vunpack.c.l.b16 %v125
    %v200 = vunpack.c.h.b16 %v125
    %v201 = vunpack.c.l.b16 %v126
    %v202 = vunpack.c.h.b16 %v126
    %v203 = vunpack.c.l.b16 %v127
    %v204 = vunpack.c.h.b16 %v127
    %v205 = vunpack.c.l.b16 %v128
    %v206 = vunpack.c.h.b16 %v128
    %v207 = vunpack.c.l.b16 %v129
    %v208 = vunpack.c.h.b16 %v129
    %v209 = vunpack.c.l.b16 %v130
    %v210 = vunpack.c.h.b16 %v130
    %v211 = vunpack.c.l.b16 %v131
    %v212 = vunpack.c.h.b16 %v131
    %v213 = vunpack.c.l.b16 %v132
    %v214 = vunpack.c.h.b16 %v132
    %v215 = vunpack.c.l.b16 %v133
    %v216 = vunpack.c.h.b16 %v133
    %v217 = vunpack.c.l.b16 %v134
    %v218 = vunpack.c.h.b16 %v134
    %v219 = vunpack.c.l.b16 %v135
    %v220 = vunpack.c.h.b16 %v135
    %v221 = vunpack.c.l.b16 %v136
    %v222 = vunpack.c.h.b16 %v136
    %v223 = vunpack.c.l.b16 %v137
    %v224 = vunpack.c.h.b16 %v137
    %v225 = vunpack.c.l.b16 %v138
    %v226 = vunpack.c.h.b16 %v138
    %v227 = vunpack.c.l.b16 %v139
    %v228 = vunpack.c.h.b16 %v139
    %v229 = vunpack.c.l.b16 %v140
    %v230 = vunpack.c.h.b16 %v140
    %v231 = vunpack.c.l.b16 %v141
    %v232 = vunpack.c.h.b16 %v141
    %v233 = vunpack.c.l.b16 %v142
    %v234 = vunpack.c.h.b16 %v142
    %v235 = vunpack.c.l.b16 %v143
    %v236 = vunpack.c.h.b16 %v143
    %v237 = vunpack.c.l.b16 %v144
    %v238 = vunpack.c.h.b16 %v144
    %v239 = vunpack.c.l.b16 %v145
    %v240 = vunpack.c.h.b16 %v145
    %v241 = vunpack.c.l.b16 %v146
    %v242 = vunpack.c.h.b16 %v146
    %v243 = vpack.c.b16 %v183, %v179
    %v244 = vpack.c.b16 %v184, %v180
    %v245 = vpack.c.b16 %v185, %v181
    %v246 = vpack.c.b16 %v186, %v182
    %v247 = vpack.c.b16 %v191, %v187
    %v248 = vpack.c.b16 %v192, %v188
    %v249 = vpack.c.b16 %v193, %v189
    %v250 = vpack.c.b16 %v194, %v190
    %v251 = vpack.c.b16 %v199, %v195
    %v252 = vpack.c.b16 %v200, %v196
    %v253 = vpack.c.b16 %v201, %v197
    %v254 = vpack.c.b16 %v202, %v198
    %v255 = vpack.c.b16 %v207, %v203
    %v256 = vpack.c.b16 %v208, %v204
    %v257 = vpack.c.b16 %v209, %v205
    %v258 = vpack.c.b16 %v210, %v206
    %v259 = vpack.c.b16 %v215, %v211
    %v260 = vpack.c.b16 %v216, %v212
    %v261 = vpack.c.b16 %v217, %v213
    %v262 = vpack.c.b16 %v218, %v214
    %v263 = vpack.c.b16 %v223, %v219
    %v264 = vpack.c.b16 %v224, %v220
    %v265 = vpack.c.b16 %v225, %v221
    %v266 = vpack.c.b16 %v226, %v222
    %v267 = vpack.c.b16 %v231, %v227
    %v268 = vpack.c.b16 %v232, %v228
    %v269 = vpack.c.b16 %v233, %v229
    %v270 = vpack.c.b16 %v234, %v230
    %v271 = vpack.c.b16 %v239, %v235
    %v272 = vpack.c.b16 %v240, %v236
    %v273 = vpack.c.b16 %v241, %v237
    %v274 = vpack.c.b16 %v242, %v238
    %307 = vmatprep.subr.bf16.mxu0 %v244
    %308 = vmatpush1.bf16.msra.mxu0 %v243
    %309 = vmatprep.subr.bf16.mxu0 %v248
    %310 = vmatpush1.bf16.msra.mxu0 %v247
    %311 = vmatprep.subr.bf16.mxu0 %v252
    %312 = vmatpush1.bf16.msra.mxu0 %v251
    %313 = vmatprep.subr.bf16.mxu0 %v256
    %314 = vmatpush1.bf16.msra.mxu0 %v255
    %315 = vmatprep.subr.bf16.mxu0 %v260
    %316 = vmatpush1.bf16.msra.mxu0 %v259
    %317 = vmatprep.subr.bf16.mxu0 %v264
    %318 = vmatpush1.bf16.msra.mxu0 %v263
    %319 = vmatprep.subr.bf16.mxu0 %v268
    %320 = vmatpush1.bf16.msra.mxu0 %v267
    %321 = vmatprep.subr.bf16.mxu0 %v272
    %322 = vmatpush1.bf16.msra.mxu0 %v271
    %323 = vmatprep.subr.bf16.mxu0 0
    %324 = vmatpush1.bf16.msra.mxu0 0
    %325 = vmatprep.subr.bf16.mxu0 0
    %326 = vmatpush1.bf16.msra.mxu0 0
    %327 = vmatprep.subr.bf16.mxu0 0
    %328 = vmatpush1.bf16.msra.mxu0 0
    %329 = vmatprep.subr.bf16.mxu0 0
    %330 = vmatpush1.bf16.msra.mxu0 0
    %331 = vmatprep.subr.bf16.mxu0 0
    %332 = vmatpush1.bf16.msra.mxu0 0
    %333 = vmatprep.subr.bf16.mxu0 0
    %334 = vmatpush1.bf16.msra.mxu0 0
    %335 = vmatprep.subr.bf16.mxu0 0
    %336 = vmatpush1.bf16.msra.mxu0 0
    %337 = vmatprep.subr.bf16.mxu0 0
    %338 = vmatpush1.bf16.msra.mxu0 0
    %339 = vmatprep.mubr.bf16.mxu0 0
    %340 = vmatmul.mubr.bf16.gmra.mrb[0].mxu0 %v114
    %v341 = vpop.f32.mrb[0].mxu0
    %v342 = vadd.f32 0.0, %v341
    %v343 = vpop.f32.mrb[0].mxu0
    %v344 = vadd.f32 0.0, %v343
    %v345 = vpop.f32.mrb[0].mxu0
    %v346 = vpop.f32.mrb[0].mxu0
    %347 = vdwg.mxu0
    %348 = vmatprep.subr.bf16.mxu0 %v246
    %349 = vmatpush1.bf16.msra.mxu0 %v245
    %350 = vmatprep.subr.bf16.mxu0 %v250
    %351 = vmatpush1.bf16.msra.mxu0 %v249
    %352 = vmatprep.subr.bf16.mxu0 %v254
    %353 = vmatpush1.bf16.msra.mxu0 %v253
    %354 = vmatprep.subr.bf16.mxu0 %v258
    %355 = vmatpush1.bf16.msra.mxu0 %v257
    %356 = vmatprep.subr.bf16.mxu0 %v262
    %357 = vmatpush1.bf16.msra.mxu0 %v261
    %358 = vmatprep.subr.bf16.mxu0 %v266
    %359 = vmatpush1.bf16.msra.mxu0 %v265
    %360 = vmatprep.subr.bf16.mxu0 %v270
    %361 = vmatpush1.bf16.msra.mxu0 %v269
    %362 = vmatprep.subr.bf16.mxu0 %v274
    %363 = vmatpush1.bf16.msra.mxu0 %v273
    %364 = vmatprep.subr.bf16.mxu0 0
    %365 = vmatpush1.bf16.msra.mxu0 0
    %366 = vmatprep.subr.bf16.mxu0 0
    %367 = vmatpush1.bf16.msra.mxu0 0
    %368 = vmatprep.subr.bf16.mxu0 0
    %369 = vmatpush1.bf16.msra.mxu0 0
    %370 = vmatprep.subr.bf16.mxu0 0
    %371 = vmatpush1.bf16.msra.mxu0 0
    %372 = vmatprep.subr.bf16.mxu0 0
    %373 = vmatpush1.bf16.msra.mxu0 0
    %374 = vmatprep.subr.bf16.mxu0 0
    %375 = vmatpush1.bf16.msra.mxu0 0
    %376 = vmatprep.subr.bf16.mxu0 0
    %377 = vmatpush1.bf16.msra.mxu0 0
    %378 = vmatprep.subr.bf16.mxu0 0
    %379 = vmatpush1.bf16.msra.mxu0 0
    %380 = vmatprep.mubr.bf16.mxu0 0
    %381 = vmatmul.mubr.bf16.gmra.mrb[0].mxu0 %v114
    %v382 = vpop.f32.mrb[0].mxu0
    %v383 = vadd.f32 0.0, %v382
    %v384 = vpop.f32.mrb[0].mxu0
    %v385 = vadd.f32 0.0, %v384
    %v386 = vpop.f32.mrb[0].mxu0
    %v387 = vpop.f32.mrb[0].mxu0
    %388 = vdwg.mxu0
    %v421 = vunpack.c.l.b16 %v81
    %v422 = vunpack.c.h.b16 %v81
    %v423 = vunpack.c.l.b16 %v82
    %v424 = vunpack.c.h.b16 %v82
    %v425 = vunpack.c.l.b16 %v83
    %v426 = vunpack.c.h.b16 %v83
    %v427 = vunpack.c.l.b16 %v84
    %v428 = vunpack.c.h.b16 %v84
    %v429 = vunpack.c.l.b16 %v85
    %v430 = vunpack.c.h.b16 %v85
    %v431 = vunpack.c.l.b16 %v86
    %v432 = vunpack.c.h.b16 %v86
    %v433 = vunpack.c.l.b16 %v87
    %v434 = vunpack.c.h.b16 %v87
    %v435 = vunpack.c.l.b16 %v88
    %v436 = vunpack.c.h.b16 %v88
    %v437 = vunpack.c.l.b16 %v89
    %v438 = vunpack.c.h.b16 %v89
    %v439 = vunpack.c.l.b16 %v90
    %v440 = vunpack.c.h.b16 %v90
    %v441 = vunpack.c.l.b16 %v91
    %v442 = vunpack.c.h.b16 %v91
    %v443 = vunpack.c.l.b16 %v92
    %v444 = vunpack.c.h.b16 %v92
    %v445 = vunpack.c.l.b16 %v93
    %v446 = vunpack.c.h.b16 %v93
    %v447 = vunpack.c.l.b16 %v94
    %v448 = vunpack.c.h.b16 %v94
    %v449 = vunpack.c.l.b16 %v95
    %v450 = vunpack.c.h.b16 %v95
    %v451 = vunpack.c.l.b16 %v96
    %v452 = vunpack.c.h.b16 %v96
    %v453 = vunpack.c.l.b16 %v97
    %v454 = vunpack.c.h.b16 %v97
    %v455 = vunpack.c.l.b16 %v98
    %v456 = vunpack.c.h.b16 %v98
    %v457 = vunpack.c.l.b16 %v99
    %v458 = vunpack.c.h.b16 %v99
    %v459 = vunpack.c.l.b16 %v100
    %v460 = vunpack.c.h.b16 %v100
    %v461 = vunpack.c.l.b16 %v101
    %v462 = vunpack.c.h.b16 %v101
    %v463 = vunpack.c.l.b16 %v102
    %v464 = vunpack.c.h.b16 %v102
    %v465 = vunpack.c.l.b16 %v103
    %v466 = vunpack.c.h.b16 %v103
    %v467 = vunpack.c.l.b16 %v104
    %v468 = vunpack.c.h.b16 %v104
    %v469 = vunpack.c.l.b16 %v105
    %v470 = vunpack.c.h.b16 %v105
    %v471 = vunpack.c.l.b16 %v106
    %v472 = vunpack.c.h.b16 %v106
    %v473 = vunpack.c.l.b16 %v107
    %v474 = vunpack.c.h.b16 %v107
    %v475 = vunpack.c.l.b16 %v108
    %v476 = vunpack.c.h.b16 %v108
    %v477 = vunpack.c.l.b16 %v109
    %v478 = vunpack.c.h.b16 %v109
    %v479 = vunpack.c.l.b16 %v110
    %v480 = vunpack.c.h.b16 %v110
    %v481 = vunpack.c.l.b16 %v111
    %v482 = vunpack.c.h.b16 %v111
    %v483 = vunpack.c.l.b16 %v112
    %v484 = vunpack.c.h.b16 %v112
    %v485 = vpack.c.b16 %v425, %v421
    %v486 = vpack.c.b16 %v426, %v422
    %v487 = vpack.c.b16 %v427, %v423
    %v488 = vpack.c.b16 %v428, %v424
    %v489 = vpack.c.b16 %v433, %v429
    %v490 = vpack.c.b16 %v434, %v430
    %v491 = vpack.c.b16 %v435, %v431
    %v492 = vpack.c.b16 %v436, %v432
    %v493 = vpack.c.b16 %v441, %v437
    %v494 = vpack.c.b16 %v442, %v438
    %v495 = vpack.c.b16 %v443, %v439
    %v496 = vpack.c.b16 %v444, %v440
    %v497 = vpack.c.b16 %v449, %v445
    %v498 = vpack.c.b16 %v450, %v446
    %v499 = vpack.c.b16 %v451, %v447
    %v500 = vpack.c.b16 %v452, %v448
    %v501 = vpack.c.b16 %v457, %v453
    %v502 = vpack.c.b16 %v458, %v454
    %v503 = vpack.c.b16 %v459, %v455
    %v504 = vpack.c.b16 %v460, %v456
    %v505 = vpack.c.b16 %v465, %v461
    %v506 = vpack.c.b16 %v466, %v462
    %v507 = vpack.c.b16 %v467, %v463
    %v508 = vpack.c.b16 %v468, %v464
    %v509 = vpack.c.b16 %v473, %v469
    %v510 = vpack.c.b16 %v474, %v470
    %v511 = vpack.c.b16 %v475, %v471
    %v512 = vpack.c.b16 %v476, %v472
    %v513 = vpack.c.b16 %v481, %v477
    %v514 = vpack.c.b16 %v482, %v478
    %v515 = vpack.c.b16 %v483, %v479
    %v516 = vpack.c.b16 %v484, %v480
    %549 = vmatprep.subr.bf16.mxu0 %v486
    %550 = vmatpush1.bf16.msra.mxu0 %v485
    %551 = vmatprep.subr.bf16.mxu0 %v490
    %552 = vmatpush1.bf16.msra.mxu0 %v489
    %553 = vmatprep.subr.bf16.mxu0 %v494
    %554 = vmatpush1.bf16.msra.mxu0 %v493
    %555 = vmatprep.subr.bf16.mxu0 %v498
    %556 = vmatpush1.bf16.msra.mxu0 %v497
    %557 = vmatprep.subr.bf16.mxu0 %v502
    %558 = vmatpush1.bf16.msra.mxu0 %v501
    %559 = vmatprep.subr.bf16.mxu0 %v506
    %560 = vmatpush1.bf16.msra.mxu0 %v505
    %561 = vmatprep.subr.bf16.mxu0 %v510
    %562 = vmatpush1.bf16.msra.mxu0 %v509
    %563 = vmatprep.subr.bf16.mxu0 %v514
    %564 = vmatpush1.bf16.msra.mxu0 %v513
    %565 = vmatprep.subr.bf16.mxu0 0
    %566 = vmatpush1.bf16.msra.mxu0 0
    %567 = vmatprep.subr.bf16.mxu0 0
    %568 = vmatpush1.bf16.msra.mxu0 0
    %569 = vmatprep.subr.bf16.mxu0 0
    %570 = vmatpush1.bf16.msra.mxu0 0
    %571 = vmatprep.subr.bf16.mxu0 0
    %572 = vmatpush1.bf16.msra.mxu0 0
    %573 = vmatprep.subr.bf16.mxu0 0
    %574 = vmatpush1.bf16.msra.mxu0 0
    %575 = vmatprep.subr.bf16.mxu0 0
    %576 = vmatpush1.bf16.msra.mxu0 0
    %577 = vmatprep.subr.bf16.mxu0 0
    %578 = vmatpush1.bf16.msra.mxu0 0
    %579 = vmatprep.subr.bf16.mxu0 0
    %580 = vmatpush1.bf16.msra.mxu0 0
    %581 = vmatprep.mubr.bf16.mxu0 0
    %582 = vmatmul.mubr.bf16.gmra.mrb[0].mxu0 %v80
    %v583 = vpop.f32.mrb[0].mxu0
    %v584 = vadd.f32 %v342, %v583
    %v585 = vpop.f32.mrb[0].mxu0
    %v586 = vadd.f32 %v344, %v585
    %v587 = vpop.f32.mrb[0].mxu0
    %v588 = vpop.f32.mrb[0].mxu0
    %589 = vdwg.mxu0
    %590 = vmatprep.subr.bf16.mxu0 %v488
    %591 = vmatpush1.bf16.msra.mxu0 %v487
    %592 = vmatprep.subr.bf16.mxu0 %v492
    %593 = vmatpush1.bf16.msra.mxu0 %v491
    %594 = vmatprep.subr.bf16.mxu0 %v496
    %595 = vmatpush1.bf16.msra.mxu0 %v495
    %596 = vmatprep.subr.bf16.mxu0 %v500
    %597 = vmatpush1.bf16.msra.mxu0 %v499
    %598 = vmatprep.subr.bf16.mxu0 %v504
    %599 = vmatpush1.bf16.msra.mxu0 %v503
    %600 = vmatprep.subr.bf16.mxu0 %v508
    %601 = vmatpush1.bf16.msra.mxu0 %v507
    %602 = vmatprep.subr.bf16.mxu0 %v512
    %603 = vmatpush1.bf16.msra.mxu0 %v511
    %604 = vmatprep.subr.bf16.mxu0 %v516
    %605 = vmatpush1.bf16.msra.mxu0 %v515
    %606 = vmatprep.subr.bf16.mxu0 0
    %607 = vmatpush1.bf16.msra.mxu0 0
    %608 = vmatprep.subr.bf16.mxu0 0
    %609 = vmatpush1.bf16.msra.mxu0 0
    %610 = vmatprep.subr.bf16.mxu0 0
    %611 = vmatpush1.bf16.msra.mxu0 0
    %612 = vmatprep.subr.bf16.mxu0 0
    %613 = vmatpush1.bf16.msra.mxu0 0
    %614 = vmatprep.subr.bf16.mxu0 0
    %615 = vmatpush1.bf16.msra.mxu0 0
    %616 = vmatprep.subr.bf16.mxu0 0
    %617 = vmatpush1.bf16.msra.mxu0 0
    %618 = vmatprep.subr.bf16.mxu0 0
    %619 = vmatpush1.bf16.msra.mxu0 0
    %620 = vmatprep.subr.bf16.mxu0 0
    %621 = vmatpush1.bf16.msra.mxu0 0
    %622 = vmatprep.mubr.bf16.mxu0 0
    %623 = vmatmul.mubr.bf16.gmra.mrb[0].mxu0 %v80
    %v624 = vpop.f32.mrb[0].mxu0
    %v625 = vadd.f32 %v383, %v624
    %v626 = vpop.f32.mrb[0].mxu0
    %v627 = vadd.f32 %v385, %v626
    %v628 = vpop.f32.mrb[0].mxu0
    %v629 = vpop.f32.mrb[0].mxu0
    %630 = vdwg.mxu0
    %v631 = vld [vmem:[#allocation8] sm:$0xf]
    %v633 = vlaneseq
    %v634 = vshrl.u32 %v633, 7
    %v635 = vsub.s32 0, %v634
    %v636 = vrot.slane %v631, %v635
    %v637 = vlaneseq
    %v638 = vshrl.u32 %v637, 7
    %v639 = vsub.s32 1, %v638
    %v640 = vrot.slane %v631, %v639
    %v641 = vlaneseq
    %v642 = vshrl.u32 %v641, 7
    %v643 = vsub.s32 2, %v642
    %v644 = vrot.slane %v631, %v643
    %v645 = vlaneseq
    %v646 = vshrl.u32 %v645, 7
    %v647 = vsub.s32 3, %v646
    %v648 = vrot.slane %v631, %v647
    %v653 = vadd.f32 %v584, %v636
    %v654 = vadd.f32 %v586, %v640
    %v655 = vadd.f32 %v625, %v644
    %v656 = vadd.f32 %v627, %v648
    %v657 = vmul.f32 %v653, 0.5
    %v658 = vtanh.pop %v657
    %v659 = vadd.f32 %v658, 1.0
    %v660 = vmul.f32 %v659, 0.5
    %v661 = vmul.f32 %v654, 0.5
    %v662 = vtanh.pop %v661
    %v663 = vadd.f32 %v662, 1.0
    %v664 = vmul.f32 %v663, 0.5
    %v665 = vmul.f32 %v655, 0.5
    %v666 = vtanh.pop %v665
    %v667 = vadd.f32 %v666, 1.0
    %v668 = vmul.f32 %v667, 0.5
    %v669 = vtanh.pop %v656
    %v670 = vld [vmem:[#allocation2] sm:$0xff]
    %v671 = vmul.f32 %v664, %v670
    %v672 = vmul.f32 %v660, %v669
    %v673 = vadd.f32 %v671, %v672
    %v674 = vtanh.pop %v673
    %v675 = vmul.f32 %v668, %v674
    %676 = vst [vmem:[#allocation10] sm:$0xff] %v675
    %677 = vst [vmem:[#allocation11] sm:$0xff] %v673
    // Predicated region
    $region42: #{tpu_custom_call.1} parent=1 // pred_check
      _
    $region43: #{tpu_custom_call.1} parent=1 // pred_check_branch
      %679 = sbr.rel (0) target = $region45
    $region44: #{tpu_custom_call.1} parent=1 // pred_region
      %s681 = ssub.s32 128, 128
      %682 = vsyncadd [#allocation4], %s681
      %s684 = sshll.u32 [#allocation10], 4
      %s685 = int_to_ptr.vmem [resolvable:$true] %s684
      %687 = dma.vmem_to_hbm [thread:$0]  %s685, 128, %s6, [#allocation4]
    $region45: #{tpu_custom_call.1} parent=1 // pred_fallthru
      _
    // Predicated region
    $region46: #{tpu_custom_call.1} parent=1 // pred_check
      _
    $region47: #{tpu_custom_call.1} parent=1 // pred_check_branch
      %689 = sbr.rel (0) target = $region49
    $region48: #{tpu_custom_call.1} parent=1 // pred_region
      %s691 = ssub.s32 128, 128
      %692 = vsyncadd [#allocation12], %s691
      %s694 = sshll.u32 [#allocation11], 4
      %s695 = int_to_ptr.vmem [resolvable:$true] %s694
      %697 = dma.vmem_to_hbm [thread:$0]  %s695, 128, %s7, [#allocation12]
    $region49: #{tpu_custom_call.1} parent=1 // pred_fallthru
      _
    // Predicated region
    $region50: #{tpu_custom_call.1} parent=1 // pred_check
      _
    $region51: #{tpu_custom_call.1} parent=1 // pred_check_branch
      %699 = sbr.rel (0) target = $region53
    $region52: #{tpu_custom_call.1} parent=1 // pred_region
      %700 = dma.done [#allocation4], 128
    $region53: #{tpu_custom_call.1} parent=1 // pred_fallthru
      _
    // Predicated region
    $region54: #{tpu_custom_call.1} parent=1 // pred_check
      _
    $region55: #{tpu_custom_call.1} parent=1 // pred_check_branch
      %702 = sbr.rel (0) target = $region57
    $region56: #{tpu_custom_call.1} parent=1 // pred_region
      %703 = dma.done [#allocation12], 128
    $region57: #{tpu_custom_call.1} parent=1 // pred_fallthru
      _
    %704 = vsyncpa [#allocation3], 1
    %705 = vsyncpa [#allocation6], 1
    %706 = vsyncpa [#allocation9], 1
    %707 = vsyncpa [#allocation4], 1
    %708 = vsyncpa [#allocation12], 1

</llo_original>
